<compile_context>
chip_gen: v6e
topology: v6e:2x2x1
jax: 0.10.0
libtpu: 0.0.40
codegen_flags: <defaults>
</compile_context>

<pallas_src>
import math
import numpy as np
import jax
import jax.numpy as jnp
from jax.experimental import pallas as pl
from jax.experimental.pallas import tpu as pltpu


# ----------------------------------------------------------------------------
# Parameter construction (deterministic, mirrors ImplicitTrans.__init__)
# ----------------------------------------------------------------------------
def build_dct_kernel() -> np.ndarray:
    """Exact replica of the numpy kernel built in __init__ (incl. the -1 wrap)."""
    conv_shape = (256, 64, 1, 1)
    kernel = np.zeros(conv_shape, dtype="float32")
    r1 = math.sqrt(1.0 / 8)
    r2 = math.sqrt(2.0 / 8)
    for i in np.arange(0.0, 8.0, 0.5):
        _u = 2 * i + 1
        for j in np.arange(0.0, 8.0, 0.5):
            _v = 2 * j + 1
            index = i * 16 + j
            index1 = int(2 * index - 1)  # -1 wraps to row 255, same as numpy in torch code
            for u in range(8):
                for v in range(8):
                    index2 = u * 8 + v
                    t = math.cos(_u * u * math.pi / 16) * math.cos(_v * v * math.pi / 16)
                    t = t * r1 if u == 0 else t * r2
                    t = t * r1 if v == 0 else t * r2
                    kernel[index1, index2, 0, 0] = t
    return kernel


def build_table() -> np.ndarray:
    table = np.array(
        [16, 16, 16, 16, 17, 18, 21, 24, 16, 16, 16, 16, 17, 19, 22, 25,
         16, 16, 17, 18, 20, 22, 25, 29, 16, 16, 18, 21, 24, 27, 31, 36,
         17, 17, 20, 24, 30, 35, 41, 47, 18, 19, 22, 27, 35, 44, 54, 65,
         21, 22, 25, 31, 41, 54, 70, 88, 24, 25, 29, 36, 47, 65, 88, 115],
        dtype=np.float32,
    ) / 255.0
    return table  # (64,)


# ----------------------------------------------------------------------------
# Pallas kernels (channels-first hot path)
# ----------------------------------------------------------------------------
def _implicit_trans_kernel(x_ref, w_ref, k_ref, o_ref):
    xw = x_ref[...] * w_ref[...]                                   # (64, tn)   VPU
    o_ref[...] = jnp.dot(                                          # (256, tn)  MXU
        k_ref[...], xw, preferred_element_type=jnp.float32
    ).astype(o_ref.dtype)


def _implicit_trans_kernel_folded(x_ref, k_ref, o_ref):
    # per-channel weight already folded into kmat columns -> no second stream
    o_ref[...] = jnp.dot(
        k_ref[...], x_ref[...], preferred_element_type=jnp.float32
    ).astype(o_ref.dtype)


def _channels_first_matmul(x3, w3, kmat, *, tn=1024):
    """x3 (and optionally w3): (B, 64, S) f32; kmat: (256, 64) f32 -> (B, 256, S)."""
    B, C, S = x3.shape
    N = kmat.shape[0]
    # tn must be a multiple of 128; if S fits in one tile use the full extent
    # (full-dim blocks are always legal, avoids any padding at small sizes).
    tile = tn if S > tn else S
    grid = (B, pl.cdiv(S, tile))        # ragged last tile handled by OOB masking

    x_spec = pl.BlockSpec((None, C, tile), lambda b, s: (b, 0, s))
    k_spec = pl.BlockSpec((N, C), lambda b, s: (0, 0))   # resident in VMEM
    o_spec = pl.BlockSpec((None, N, tile), lambda b, s: (b, 0, s))

    if w3 is None:
        kernel = _implicit_trans_kernel_folded
        in_specs = [x_spec, k_spec]
        operands = (x3, kmat)
    else:
        kernel = _implicit_trans_kernel
        in_specs = [x_spec, x_spec, k_spec]
        operands = (x3, w3, kmat)

    return pl.pallas_call(
        kernel,
        out_shape=jax.ShapeDtypeStruct((B, N, S), jnp.float32),
        grid_spec=pltpu.PrefetchScalarGridSpec(
            num_scalar_prefetch=0,
            grid=grid,
            in_specs=in_specs,
            out_specs=o_spec,
        ),
        compiler_params=pltpu.CompilerParams(
            dimension_semantics=("parallel", "parallel"),
        ),
    )(*operands)


# ----------------------------------------------------------------------------
# Full forward (minimal plain-JAX glue around the Pallas hot path)
# ----------------------------------------------------------------------------
def implicit_trans_forward(x, weight, kernel_4d, table, factor, bias, *, tn=1024):
    """
    x         : (B, 64, H, W)  NCHW float32
    weight    : broadcastable to x (full tensor or per-channel (1,64,1,1))
    kernel_4d : (256, 64, 1, 1)
    table     : (64,)   factor/bias : (256,)
    returns   : (B, 64, 2H, 2W)
    """
    B, C, H, W = x.shape
    assert C == 64, "ImplicitTrans uses a fixed (256, 64) DCT kernel"
    S = H * W

    # _table = repeat_interleave(table, 4) * factor + bias   -> (256,)
    _table = jnp.repeat(table.reshape(-1), 4, axis=0) * factor.reshape(-1) + bias.reshape(-1)
    kmat = kernel_4d[:, :, 0, 0] * _table[:, None]            # (256, 64)

    # NCHW is already channel-major per batch: this reshape is free.
    x3 = x.reshape(B, C, S)

    if (weight.ndim == 4 and weight.shape[0] == 1 and weight.shape[1] == C
            and weight.shape[2] == 1 and weight.shape[3] == 1):
        # Per-channel weight: fold into kmat ((x*w) @ K^T == x @ (diag(w) K)^T)
        kmat_f = kmat * weight.reshape(1, C)
        out = _channels_first_matmul(x3, None, kmat_f, tn=tn)          # (B, 256, S)
    else:
        w3 = jnp.broadcast_to(weight, x.shape).reshape(B, C, S)
        out = _channels_first_matmul(x3, w3, kmat, tn=tn)              # (B, 256, S)

    # PixelShuffle(2): conv output channels are already in (c, dy, dx) order,
    # so only one output permute remains (plain-JAX glue).
    y = out.reshape(B, 64, 2, 2, H, W)
    y = jnp.transpose(y, (0, 1, 4, 2, 5, 3)).reshape(B, 64, 2 * H, 2 * W)
    return y


# ----------------------------------------------------------------------------
# Pure-JAX reference for sanity checking
# ----------------------------------------------------------------------------
def reference_forward(x, weight, kernel_4d, table, factor, bias):
    new_table = jnp.repeat(table.reshape(-1), 4, axis=0)
    _table = new_table * factor.reshape(-1) + bias.reshape(-1)
    _kernel = kernel_4d[:, :, 0, 0] * _table[:, None]         # (256, 64)
    xw = x * jnp.broadcast_to(weight, x.shape)
    y = jnp.einsum("bchw,oc->bohw", xw, _kernel)              # 1x1 conv
    B, _, H, W = x.shape
    r = 2
    y = y.reshape(B, 64, r, r, H, W).transpose(0, 1, 4, 2, 5, 3).reshape(B, 64, H * r, W * r)
    return y


if __name__ == "__main__":
    key = jax.random.PRNGKey(0)
    k1, k2, k3, k4, k5 = jax.random.split(key, 5)

    kernel_4d = jnp.asarray(build_dct_kernel())                # (256, 64, 1, 1)
    table = jnp.asarray(build_table())                         # (64,)
    factor = jnp.ones((256,), dtype=jnp.float32)               # nn.Parameter ones
    bias = jnp.zeros((256,), dtype=jnp.float32)                # nn.Parameter zeros

    # --- main test: full-shape weight, small image --------------------------
    B, C, H, W = 2, 64, 8, 8
    x = jax.random.normal(k1, (B, C, H, W), dtype=jnp.float32)
    weight = jax.random.normal(k2, (B, C, H, W), dtype=jnp.float32)
    y = jax.block_until_ready(
        implicit_trans_forward(x, weight, kernel_4d, table, factor, bias))
    y_ref = reference_forward(x, weight, kernel_4d, table, factor, bias)
    assert y.shape == (B, 64, 2 * H, 2 * W), y.shape
    assert jnp.allclose(y, y_ref, atol=1e-4, rtol=1e-4), float(jnp.max(jnp.abs(y - y_ref)))

    # --- ragged-spatial test: multi-step grid + masked tail (no jnp.pad) ----
    B2, H2, W2 = 1, 12, 12                 # S = 144 -> one full 128 tile + ragged 16
    x2 = jax.random.normal(k3, (B2, C, H2, W2), dtype=jnp.float32)
    w2 = jax.random.normal(k4, (B2, C, H2, W2), dtype=jnp.float32)
    y2 = jax.block_until_ready(
        implicit_trans_forward(x2, w2, kernel_4d, table, factor, bias, tn=128))
    y2_ref = reference_forward(x2, w2, kernel_4d, table, factor, bias)
    assert jnp.allclose(y2, y2_ref, atol=1e-4, rtol=1e-4), float(jnp.max(jnp.abs(y2 - y2_ref)))

    # --- per-channel weight: folded-into-kmat fast path ----------------------
    w_pc = jax.random.normal(k5, (1, C, 1, 1), dtype=jnp.float32)
    y3 = jax.block_until_ready(
        implicit_trans_forward(x, w_pc, kernel_4d, table, factor, bias))
    y3_ref = reference_forward(x, w_pc, kernel_4d, table, factor, bias)
    assert jnp.allclose(y3, y3_ref, atol=1e-4, rtol=1e-4), float(jnp.max(jnp.abs(y3 - y3_ref)))

    print("KERNEL_OK")
</pallas_src>

<mosaic_0001>
module attributes {stable_mosaic.version = 11 : i64} {
  func.func @_implicit_trans_kernel(%arg0: i32, %arg1: i32, %arg2: memref<1x64x64xf32, #tpu.memory_space<vmem>>, %arg3: memref<1x64x64xf32, #tpu.memory_space<vmem>>, %arg4: memref<256x64xf32, #tpu.memory_space<vmem>>, %arg5: memref<1x256x64xf32, #tpu.memory_space<vmem>>) attributes {dimension_semantics = [#tpu.dimension_semantics<parallel>, #tpu.dimension_semantics<parallel>], iteration_bounds = array<i64: 2, 1>, scalar_prefetch = 0 : i64, scratch_operands = 0 : i64, tpu.core_type = #tpu.core_type<tc>, window_params = [{transform_indices = @transform_0, window_bounds = array<i64: 1, 64, 64>}, {transform_indices = @transform_1, window_bounds = array<i64: 1, 64, 64>}, {pipeline_mode = #tpu.pipeline_mode<synchronous>, transform_indices = @transform_2, window_bounds = array<i64: 256, 64>}, {transform_indices = @transform_3, window_bounds = array<i64: 1, 256, 64>}]} {
    %c0 = arith.constant 0 : index
    %c0_0 = arith.constant 0 : index
    %c0_1 = arith.constant 0 : index
    %0 = vector.load %arg2[%c0, %c0_0, %c0_1] : memref<1x64x64xf32, #tpu.memory_space<vmem>>, vector<1x64x64xf32>
    %1 = vector.shape_cast %0 : vector<1x64x64xf32> to vector<64x64xf32>
    %c0_2 = arith.constant 0 : index
    %c0_3 = arith.constant 0 : index
    %c0_4 = arith.constant 0 : index
    %2 = vector.load %arg3[%c0_2, %c0_3, %c0_4] : memref<1x64x64xf32, #tpu.memory_space<vmem>>, vector<1x64x64xf32>
    %3 = vector.shape_cast %2 : vector<1x64x64xf32> to vector<64x64xf32>
    %4 = arith.mulf %1, %3 : vector<64x64xf32>
    %c0_5 = arith.constant 0 : index
    %c0_6 = arith.constant 0 : index
    %5 = vector.load %arg4[%c0_5, %c0_6] : memref<256x64xf32, #tpu.memory_space<vmem>>, vector<256x64xf32>
    %cst = arith.constant dense<0.000000e+00> : vector<256x64xf32>
    %6 = tpu.matmul %5, %4, %cst {dimension_numbers = #tpu.dot_dimension_numbers<[1], [0], [0], [1], [0, 0, 1, 1], [], []>} : vector<256x64xf32>, vector<64x64xf32>, vector<256x64xf32> -> vector<256x64xf32>
    %c0_7 = arith.constant 0 : index
    %c0_8 = arith.constant 0 : index
    %c0_9 = arith.constant 0 : index
    %7 = vector.load %arg5[%c0_7, %c0_8, %c0_9] : memref<1x256x64xf32, #tpu.memory_space<vmem>>, vector<1x256x64xf32>
    %8 = vector.shape_cast %7 : vector<1x256x64xf32> to vector<256x64xf32>
    %9 = vector.shape_cast %6 : vector<256x64xf32> to vector<1x256x64xf32>
    tpu.vector_store %arg5[%c0_7, %c0_8, %c0_9], %9 {strides = array<i32>} : memref<1x256x64xf32, #tpu.memory_space<vmem>>, vector<1x256x64xf32>,
    return
  }
  func.func @transform_0(%arg0: i32, %arg1: i32) -> (i32, i32, i32) {
    %c0_i32 = arith.constant 0 : i32
    %c0_i32_0 = arith.constant 0 : i32
    return %arg0, %c0_i32, %arg1 : i32, i32, i32
  }
  func.func @transform_1(%arg0: i32, %arg1: i32) -> (i32, i32, i32) {
    %c0_i32 = arith.constant 0 : i32
    %c0_i32_0 = arith.constant 0 : i32
    return %arg0, %c0_i32, %arg1 : i32, i32, i32
  }
  func.func @transform_2(%arg0: i32, %arg1: i32) -> (i32, i32) {
    %c0_i32 = arith.constant 0 : i32
    %c0_i32_0 = arith.constant 0 : i32
    %c0_i32_1 = arith.constant 0 : i32
    return %c0_i32, %c0_i32_0 : i32, i32
  }
  func.func @transform_3(%arg0: i32, %arg1: i32) -> (i32, i32, i32) {
    %c0_i32 = arith.constant 0 : i32
    %c0_i32_0 = arith.constant 0 : i32
    return %arg0, %c0_i32, %arg1 : i32, i32, i32
  }
}

</mosaic_0001>

<llo_original>
// kernel: tpu_custom_call.1
$region0: #{tpu_custom_call.1}
  #allocation0 [shape = 'u32[]', space=smem, size = 0x4, offset = 0x4, fixed_abs, tag = 'smem constant byte address 0x4 - core index']
  #allocation1 [shape = 'u32[144,128]{1,0:T(1,128)}', space=vmem, size = 0x12000, scoped, tag = 'internal scratch']
  %s0 = inlined_call_operand.vmem [shape: f32[2,64,64], index: 0, kind: input, shape index: {}]
  %s1 = inlined_call_operand.vmem [shape: f32[2,64,64], index: 1, kind: input, shape index: {}]
  %s2 = inlined_call_operand.vmem [shape: f32[256,64], index: 2, kind: input, shape index: {}]
  %s3 = inlined_call_operand.vmem [shape: f32[2,256,64], index: 3, kind: output, shape index: {}]
  %s4 = sld [smem:[#allocation0]]
  $region45: #{tpu_custom_call.1} parent=0
    _
  %s6 = ssub.s32 1, %s4
  %s7 = scalar_select 0, %s6, %s4
  loop: start=0, step=1, limit=4
  $region2: #{tpu_custom_call.1} parent=0 // loop_pre_header
    _
  $region3: #{tpu_custom_call.1} parent=0 // loop_header
    %s9 = sphi 0, %s13
    %p10 = scmp.ge.s32.totalorder %s9, 4
    %s16 = sphi 0, %s28
    %s17 = sphi 0, %s24
    %s18 = sphi 0, %s16
    %s19 = sphi 0, %s17
    %s20 = sphi 0, %s18
    %s21 = sphi 0, %s19
    %s33 = sphi 0, %s35
    %s36 = sphi 0, %s33
    %s37 = sphi 0, %s36
    %s53 = sphi 0, %s37
    %s61 = sphi 0, %s63
    %s64 = sphi 0, %s61
    %s65 = sphi 0, %s64
    %s81 = sphi 0, %s65
    %s85 = sphi 0, %s85
    %s87 = sphi 0, %s85
    %s88 = sphi 0, %s87
    %s102 = sphi 0, %s88
    %s110 = sphi 0, %s112
    %s113 = sphi 0, %s110
    %s114 = sphi 0, %s113
    %s130 = sphi 0, %s114
  $region4: #{tpu_custom_call.1} parent=0 // loop_header_branch
    %12 = sbr.rel (%p10) target = $region8
  $region5: #{tpu_custom_call.1} parent=0 // loop_body
    %s14 = ssub.s32 %s9, 1
    %s15 = ssub.s32 %s9, 2
    %s22 = sadd.s32 1, %s17
    %p23 = scmp.ge.s32.totalorder %s22, 1
    %s24 = scalar_select %p23, 0, %s22
    %s25 = sadd.s32 1, %s16
    %s26 = scalar_select %p23, %s25, %s16
    %p27 = scmp.ge.s32.totalorder %s26, 2
    %s28 = scalar_select %p27, 0, %s26
    %s29 = ssub.s32 %s16, %s28
    %s30 = ssub.s32 %s17, %s24
    %s31 = sor.u32 %s29, %s30
    %p32 = scmp.eq.s32.totalorder %s31, 0
    %s34 = sadd.s32 %s33, 1
    %s35 = scalar_select %p32, %s33, %s34
    %p38 = pneg %p32
    %p39 = scmp.eq.s32.totalorder %s9, 1
    %p40 = por %p38, %p39
    %p41 = scmp.ne.s32.totalorder %s33, %s36
    %p42 = scmp.eq.s32.totalorder %s9, 0
    %p43 = por %p41, %p42
    %p44 = scmp.ne.s32.totalorder %s33, %s36
    %p45 = scmp.eq.s32.totalorder %s14, 1
    %p46 = por %p44, %p45
    %p47 = scmp.ne.s32.totalorder %s36, %s37
    %p48 = scmp.eq.s32.totalorder %s14, 0
    %p49 = por %p47, %p48
    %p50 = scmp.ne.s32.totalorder %s36, %s37
    %p51 = scmp.eq.s32.totalorder %s15, 1
    %p52 = por %p50, %p51
    %p54 = scmp.ne.s32.totalorder %s37, %s53
    %p55 = scmp.eq.s32.totalorder %s15, 0
    %p56 = por %p54, %p55
    %s57 = ssub.s32 %s16, %s28
    %s58 = ssub.s32 %s17, %s24
    %s59 = sor.u32 %s57, %s58
    %p60 = scmp.eq.s32.totalorder %s59, 0
    %s62 = sadd.s32 %s61, 1
    %s63 = scalar_select %p60, %s61, %s62
    %p66 = pneg %p60
    %p67 = scmp.eq.s32.totalorder %s9, 1
    %p68 = por %p66, %p67
    %p69 = scmp.ne.s32.totalorder %s61, %s64
    %p70 = scmp.eq.s32.totalorder %s9, 0
    %p71 = por %p69, %p70
    %p72 = scmp.ne.s32.totalorder %s61, %s64
    %p73 = scmp.eq.s32.totalorder %s14, 1
    %p74 = por %p72, %p73
    %p75 = scmp.ne.s32.totalorder %s64, %s65
    %p76 = scmp.eq.s32.totalorder %s14, 0
    %p77 = por %p75, %p76
    %p78 = scmp.ne.s32.totalorder %s64, %s65
    %p79 = scmp.eq.s32.totalorder %s15, 1
    %p80 = por %p78, %p79
    %p82 = scmp.ne.s32.totalorder %s65, %s81
    %p83 = scmp.eq.s32.totalorder %s15, 0
    %p84 = por %p82, %p83
    %s86 = sadd.s32 %s85, 1
    %p89 = scmp.eq.s32.totalorder %s9, 1
    %p90 = scmp.ne.s32.totalorder %s85, %s87
    %p91 = scmp.eq.s32.totalorder %s9, 0
    %p92 = por %p90, %p91
    %p93 = scmp.ne.s32.totalorder %s85, %s87
    %p94 = scmp.eq.s32.totalorder %s14, 1
    %p95 = por %p93, %p94
    %p96 = scmp.ne.s32.totalorder %s87, %s88
    %p97 = scmp.eq.s32.totalorder %s14, 0
    %p98 = por %p96, %p97
    %p99 = scmp.ne.s32.totalorder %s87, %s88
    %p100 = scmp.eq.s32.totalorder %s15, 1
    %p101 = por %p99, %p100
    %p103 = scmp.ne.s32.totalorder %s88, %s102
    %p104 = scmp.eq.s32.totalorder %s15, 0
    %p105 = por %p103, %p104
    %s106 = ssub.s32 %s16, %s28
    %s107 = ssub.s32 %s17, %s24
    %s108 = sor.u32 %s106, %s107
    %p109 = scmp.eq.s32.totalorder %s108, 0
    %s111 = sadd.s32 %s110, 1
    %s112 = scalar_select %p109, %s110, %s111
    %p115 = pneg %p109
    %p116 = scmp.eq.s32.totalorder %s9, 1
    %p117 = por %p115, %p116
    %p118 = scmp.ne.s32.totalorder %s110, %s113
    %p119 = scmp.eq.s32.totalorder %s9, 0
    %p120 = por %p118, %p119
    %p121 = scmp.ne.s32.totalorder %s110, %s113
    %p122 = scmp.eq.s32.totalorder %s14, 1
    %p123 = por %p121, %p122
    %p124 = scmp.ne.s32.totalorder %s113, %s114
    %p125 = scmp.eq.s32.totalorder %s14, 0
    %p126 = por %p124, %p125
    %p127 = scmp.ne.s32.totalorder %s113, %s114
    %p128 = scmp.eq.s32.totalorder %s15, 1
    %p129 = por %p127, %p128
    %p131 = scmp.ne.s32.totalorder %s114, %s130
    %p132 = scmp.eq.s32.totalorder %s15, 0
    %p133 = por %p131, %p132
    %p134 = scmp.le.s32.totalorder 1, %s9
    %p135 = scmp.lt.s32.totalorder %s9, 3
    %p136 = pnand %p134, %p135
    %p137 = pneg %p136
    // Predicated region
    $region9: #{tpu_custom_call.1} parent=5 // pred_check
      _
    $region10: #{tpu_custom_call.1} parent=5 // pred_check_branch
      %139 = sbr.rel (%p136) target = $region12
    $region11: #{tpu_custom_call.1} parent=5 // pred_region
      %s140 = ssub.s32 %s9, 1
      // Predicated region
      $region13: #{tpu_custom_call.1} parent=11 // pred_check
        %p141 = pneg %p98
      $region14: #{tpu_custom_call.1} parent=11 // pred_check_branch
        %143 = sbr.rel (%p141) target = $region16
      $region15: #{tpu_custom_call.1} parent=11 // pred_region
        _
      $region16: #{tpu_custom_call.1} parent=11 // pred_fallthru
        _
    $region12: #{tpu_custom_call.1} parent=5 // pred_fallthru
      _
    %p144 = scmp.lt.s32.totalorder %s9, 2
    // Predicated region
    $region17: #{tpu_custom_call.1} parent=5 // pred_check
      %p145 = pneg %p144
    $region18: #{tpu_custom_call.1} parent=5 // pred_check_branch
      %147 = sbr.rel (%p145) target = $region20
    $region19: #{tpu_custom_call.1} parent=5 // pred_region
      // Predicated region
      $region21: #{tpu_custom_call.1} parent=19 // pred_check
        %p148 = pneg %p43
      $region22: #{tpu_custom_call.1} parent=19 // pred_check_branch
        %150 = sbr.rel (%p148) target = $region24
      $region23: #{tpu_custom_call.1} parent=19 // pred_region
        %p151 = scmp.lt.s32.totalorder %s16, 1
        %s152 = scalar_select %p151, %s16, 1
        %p153 = scmp.lt.s32.totalorder %s17, 0
        %s154 = scalar_select %p153, %s17, 0
        %s155 = smul.addr %s152, 8
        %s156 = sadd.s32 %s154, %s155
        %s157 = smul.addr %s156, 8
        %s158 = scalar_lea.vmem %s0, %s157
      $region24: #{tpu_custom_call.1} parent=19 // pred_fallthru
        _
      // Predicated region
      $region25: #{tpu_custom_call.1} parent=19 // pred_check
        %p159 = pneg %p71
      $region26: #{tpu_custom_call.1} parent=19 // pred_check_branch
        %161 = sbr.rel (%p159) target = $region28
      $region27: #{tpu_custom_call.1} parent=19 // pred_region
        %p162 = scmp.lt.s32.totalorder %s16, 1
        %s163 = scalar_select %p162, %s16, 1
        %p164 = scmp.lt.s32.totalorder %s17, 0
        %s165 = scalar_select %p164, %s17, 0
        %s166 = smul.addr %s163, 8
        %s167 = sadd.s32 %s165, %s166
        %s168 = smul.addr %s167, 8
        %s169 = scalar_lea.vmem %s1, %s168
      $region28: #{tpu_custom_call.1} parent=19 // pred_fallthru
        _
    $region20: #{tpu_custom_call.1} parent=5 // pred_fallthru
      _
    %p170 = scmp.le.s32.totalorder 1, %s9
    %p171 = scmp.lt.s32.totalorder %s9, 3
    %p172 = pnand %p170, %p171
    %p173 = pneg %p172
    // Predicated region
    $region29: #{tpu_custom_call.1} parent=5 // pred_check
      _
    $region30: #{tpu_custom_call.1} parent=5 // pred_check_branch
      %175 = sbr.rel (%p172) target = $region32
    $region31: #{tpu_custom_call.1} parent=5 // pred_region
      %s176 = ssub.s32 %s9, 1
      %p177 = scmp.lt.s32.totalorder %s18, 1
      %s178 = scalar_select %p177, %s18, 1
      %p179 = scmp.lt.s32.totalorder %s19, 0
      %s180 = scalar_select %p179, %s19, 0
      %s181 = smul.addr %s178, 8
      %s182 = sadd.s32 %s180, %s181
      %s183 = smul.addr %s182, 8
      %s184 = scalar_lea.vmem %s0, %s183
      %p185 = pneg %p49
      %p186 = pneg %p46
      %p187 = scmp.lt.s32.totalorder %s18, 1
      %s188 = scalar_select %p187, %s18, 1
      %p189 = scmp.lt.s32.totalorder %s19, 0
      %s190 = scalar_select %p189, %s19, 0
      %s191 = smul.addr %s188, 8
      %s192 = sadd.s32 %s190, %s191
      %s193 = smul.addr %s192, 8
      %s194 = scalar_lea.vmem %s1, %s193
      %p195 = pneg %p77
      %p196 = pneg %p74
      %p197 = pneg %p98
      %p198 = pneg %p95
      %p199 = pneg %p126
      %p200 = pneg %p123
      %p201 = scmp.lt.s32.totalorder %s18, 1
      %s202 = scalar_select %p201, %s18, 1
      %p203 = scmp.lt.s32.totalorder %s19, 0
      %s204 = scalar_select %p203, %s19, 0
      %s205 = smul.addr %s202, 32
      %s206 = sadd.s32 %s204, %s205
      %s207 = smul.addr %s206, 8
      %s208 = scalar_lea.vmem %s3, %s207
      %p209 = scmp.lt.s32.totalorder %s18, 1
      %s210 = scalar_select %p209, %s18, 1
      %p211 = scmp.lt.s32.totalorder %s19, 0
      %s212 = scalar_select %p211, %s19, 0
      %s213 = smul.addr %s210, 8
      %s214 = sadd.s32 %s212, %s213
      %s215 = smul.addr %s214, 8
      %s216 = scalar_lea.vmem %s0, %s215
      %p217 = scmp.lt.s32.totalorder %s18, 1
      %s218 = scalar_select %p217, %s18, 1
      %p219 = scmp.lt.s32.totalorder %s19, 0
      %s220 = scalar_select %p219, %s19, 0
      %s221 = smul.addr %s218, 8
      %s222 = sadd.s32 %s220, %s221
      %s223 = smul.addr %s222, 8
      %s224 = scalar_lea.vmem %s1, %s223
      %p225 = scmp.lt.s32.totalorder %s18, 1
      %s226 = scalar_select %p225, %s18, 1
      %p227 = scmp.lt.s32.totalorder %s19, 0
      %s228 = scalar_select %p227, %s19, 0
      %s229 = smul.addr %s226, 32
      %s230 = sadd.s32 %s228, %s229
      %s231 = smul.addr %s230, 8
      %s232 = scalar_lea.vmem %s3, %s231
      %v233 = vld [vmem:[%s216] sm:$0xff]
      %v234 = vld [vmem:[%s216 + $0x8] sm:$0xff]
      %v235 = vld [vmem:[%s216 + $0x10] sm:$0xff]
      %v236 = vld [vmem:[%s216 + $0x18] sm:$0xff]
      %v237 = vld [vmem:[%s216 + $0x20] sm:$0xff]
      %v238 = vld [vmem:[%s216 + $0x28] sm:$0xff]
      %v239 = vld [vmem:[%s216 + $0x30] sm:$0xff]
      %v240 = vld [vmem:[%s216 + $0x38] sm:$0xff]
      %v241 = vld [vmem:[%s224] sm:$0xff]
      %v242 = vld [vmem:[%s224 + $0x8] sm:$0xff]
      %v243 = vld [vmem:[%s224 + $0x10] sm:$0xff]
      %v244 = vld [vmem:[%s224 + $0x18] sm:$0xff]
      %v245 = vld [vmem:[%s224 + $0x20] sm:$0xff]
      %v246 = vld [vmem:[%s224 + $0x28] sm:$0xff]
      %v247 = vld [vmem:[%s224 + $0x30] sm:$0xff]
      %v248 = vld [vmem:[%s224 + $0x38] sm:$0xff]
      %v249 = vmul.f32 %v233, %v241
      %v250 = vmul.f32 %v234, %v242
      %v251 = vmul.f32 %v235, %v243
      %v252 = vmul.f32 %v236, %v244
      %v253 = vmul.f32 %v237, %v245
      %v254 = vmul.f32 %v238, %v246
      %v255 = vmul.f32 %v239, %v247
      %v256 = vmul.f32 %v240, %v248
      %v257 = vld [vmem:[%s2] sm:$0xff]
      %v258 = vld [vmem:[%s2 + $0x8] sm:$0xff]
      %v259 = vld [vmem:[%s2 + $0x10] sm:$0xff]
      %v260 = vld [vmem:[%s2 + $0x18] sm:$0xff]
      %v261 = vld [vmem:[%s2 + $0x20] sm:$0xff]
      %v262 = vld [vmem:[%s2 + $0x28] sm:$0xff]
      %v263 = vld [vmem:[%s2 + $0x30] sm:$0xff]
      %v264 = vld [vmem:[%s2 + $0x38] sm:$0xff]
      %v265 = vld [vmem:[%s2 + $0x40] sm:$0xff]
      %v266 = vld [vmem:[%s2 + $0x48] sm:$0xff]
      %v267 = vld [vmem:[%s2 + $0x50] sm:$0xff]
      %v268 = vld [vmem:[%s2 + $0x58] sm:$0xff]
      %v269 = vld [vmem:[%s2 + $0x60] sm:$0xff]
      %v270 = vld [vmem:[%s2 + $0x68] sm:$0xff]
      %v271 = vld [vmem:[%s2 + $0x70] sm:$0xff]
      %v272 = vld [vmem:[%s2 + $0x78] sm:$0xff]
      %v273 = vld [vmem:[%s2 + $0x80] sm:$0xff]
      %v274 = vld [vmem:[%s2 + $0x88] sm:$0xff]
      %v275 = vld [vmem:[%s2 + $0x90] sm:$0xff]
      %v276 = vld [vmem:[%s2 + $0x98] sm:$0xff]
      %v277 = vld [vmem:[%s2 + $0xa0] sm:$0xff]
      %v278 = vld [vmem:[%s2 + $0xa8] sm:$0xff]
      %v279 = vld [vmem:[%s2 + $0xb0] sm:$0xff]
      %v280 = vld [vmem:[%s2 + $0xb8] sm:$0xff]
      %v281 = vld [vmem:[%s2 + $0xc0] sm:$0xff]
      %v282 = vld [vmem:[%s2 + $0xc8] sm:$0xff]
      %v283 = vld [vmem:[%s2 + $0xd0] sm:$0xff]
      %v284 = vld [vmem:[%s2 + $0xd8] sm:$0xff]
      %v285 = vld [vmem:[%s2 + $0xe0] sm:$0xff]
      %v286 = vld [vmem:[%s2 + $0xe8] sm:$0xff]
      %v287 = vld [vmem:[%s2 + $0xf0] sm:$0xff]
      %v288 = vld [vmem:[%s2 + $0xf8] sm:$0xff]
      %vm289 = vcmask 523264
      %v291 = vsel %vm289, %v257, 0
      %v294 = vsel %vm289, %v258, 0
      %v297 = vsel %vm289, %v259, 0
      %v300 = vsel %vm289, %v260, 0
      %v303 = vsel %vm289, %v261, 0
      %v306 = vsel %vm289, %v262, 0
      %v309 = vsel %vm289, %v263, 0
      %v312 = vsel %vm289, %v264, 0
      %v315 = vsel %vm289, %v265, 0
      %v318 = vsel %vm289, %v266, 0
      %v321 = vsel %vm289, %v267, 0
      %v324 = vsel %vm289, %v268, 0
      %v327 = vsel %vm289, %v269, 0
      %v330 = vsel %vm289, %v270, 0
      %v333 = vsel %vm289, %v271, 0
      %v336 = vsel %vm289, %v272, 0
      %v339 = vsel %vm289, %v273, 0
      %v342 = vsel %vm289, %v274, 0
      %v345 = vsel %vm289, %v275, 0
      %v348 = vsel %vm289, %v276, 0
      %v351 = vsel %vm289, %v277, 0
      %v354 = vsel %vm289, %v278, 0
      %v357 = vsel %vm289, %v279, 0
      %v360 = vsel %vm289, %v280, 0
      %v363 = vsel %vm289, %v281, 0
      %v366 = vsel %vm289, %v282, 0
      %v369 = vsel %vm289, %v283, 0
      %v372 = vsel %vm289, %v284, 0
      %v375 = vsel %vm289, %v285, 0
      %v378 = vsel %vm289, %v286, 0
      %v381 = vsel %vm289, %v287, 0
      %v384 = vsel %vm289, %v288, 0
      %386 = vmatprep.subr.mxu0 0.0
      %387 = vmatpush1.msra.mxu0 0.0
      %388 = vmatprep.subr.mxu0 0.0
      %389 = vmatpush1.msra.mxu0 0.0
      %390 = vmatprep.subr.mxu0 0.0
      %391 = vmatpush1.msra.mxu0 0.0
      %392 = vmatprep.subr.mxu0 0.0
      %393 = vmatpush1.msra.mxu0 0.0
      %394 = vmatprep.subr.mxu0 0.0
      %395 = vmatpush1.msra.mxu0 0.0
      %396 = vmatprep.subr.mxu0 0.0
      %397 = vmatpush1.msra.mxu0 0.0
      %398 = vmatprep.subr.mxu0 0.0
      %399 = vmatpush1.msra.mxu0 0.0
      %400 = vmatprep.subr.mxu0 0.0
      %401 = vmatpush1.msra.mxu0 0.0
      %402 = vmatprep.subr.mxu0 0.0
      %403 = vmatpush1.msra.mxu0 %v256
      %404 = vmatprep.subr.mxu0 0.0
      %405 = vmatpush1.msra.mxu0 %v255
      %406 = vmatprep.subr.mxu0 0.0
      %407 = vmatpush1.msra.mxu0 %v254
      %408 = vmatprep.subr.mxu0 0.0
      %409 = vmatpush1.msra.mxu0 %v253
      %410 = vmatprep.subr.mxu0 0.0
      %411 = vmatpush1.msra.mxu0 %v252
      %412 = vmatprep.subr.mxu0 0.0
      %413 = vmatpush1.msra.mxu0 %v251
      %414 = vmatprep.subr.mxu0 0.0
      %415 = vmatpush1.msra.mxu0 %v250
      %416 = vmatprep.subr.mxu0 0.0
      %417 = vmatpush1.msra.mxu0 %v249
      %418 = vmatprep.subr.mxu0 0.0
      %419 = vmatpush2.msra.mxu0 0.0
      %420 = vmatprep.subr.mxu0 0.0
      %421 = vmatpush2.msra.mxu0 0.0
      %422 = vmatprep.subr.mxu0 0.0
      %423 = vmatpush2.msra.mxu0 0.0
      %424 = vmatprep.subr.mxu0 0.0
      %425 = vmatpush2.msra.mxu0 0.0
      %426 = vmatprep.subr.mxu0 0.0
      %427 = vmatpush2.msra.mxu0 0.0
      %428 = vmatprep.subr.mxu0 0.0
      %429 = vmatpush2.msra.mxu0 0.0
      %430 = vmatprep.subr.mxu0 0.0
      %431 = vmatpush2.msra.mxu0 0.0
      %432 = vmatprep.subr.mxu0 0.0
      %433 = vmatpush2.msra.mxu0 0.0
      %434 = vmatprep.subr.mxu0 0.0
      %435 = vmatpush2.msra.mxu0 0.0
      %436 = vmatprep.subr.mxu0 0.0
      %437 = vmatpush2.msra.mxu0 0.0
      %438 = vmatprep.subr.mxu0 0.0
      %439 = vmatpush2.msra.mxu0 0.0
      %440 = vmatprep.subr.mxu0 0.0
      %441 = vmatpush2.msra.mxu0 0.0
      %442 = vmatprep.subr.mxu0 0.0
      %443 = vmatpush2.msra.mxu0 0.0
      %444 = vmatprep.subr.mxu0 0.0
      %445 = vmatpush2.msra.mxu0 0.0
      %446 = vmatprep.subr.mxu0 0.0
      %447 = vmatpush2.msra.mxu0 0.0
      %448 = vmatprep.subr.mxu0 0.0
      %449 = vmatpush2.msra.mxu0 0.0
      %450 = vmatprep.mubr.f32.mxu0 0.0
      %451 = vmatmul.mubr.f32.gmra.mxu0 %v291
      %v452 = vpop.f32.mrf.mxu0
      %v453 = vadd.f32 0.0, %v452
      %v454 = vpop.f32.mrf.mxu0
      %455 = vmatprep.mubr.f32.mxu0 0.0
      %456 = vmatmul.mubr.f32.gmra.mxu0 %v294
      %v457 = vpop.f32.mrf.mxu0
      %v458 = vadd.f32 0.0, %v457
      %v459 = vpop.f32.mrf.mxu0
      %460 = vmatprep.mubr.f32.mxu0 0.0
      %461 = vmatmul.mubr.f32.gmra.mxu0 %v297
      %v462 = vpop.f32.mrf.mxu0
      %v463 = vadd.f32 0.0, %v462
      %v464 = vpop.f32.mrf.mxu0
      %465 = vmatprep.mubr.f32.mxu0 0.0
      %466 = vmatmul.mubr.f32.gmra.mxu0 %v300
      %v467 = vpop.f32.mrf.mxu0
      %v468 = vadd.f32 0.0, %v467
      %v469 = vpop.f32.mrf.mxu0
      %470 = vmatprep.mubr.f32.mxu0 0.0
      %471 = vmatmul.mubr.f32.gmra.mxu0 %v303
      %v472 = vpop.f32.mrf.mxu0
      %v473 = vadd.f32 0.0, %v472
      %v474 = vpop.f32.mrf.mxu0
      %475 = vmatprep.mubr.f32.mxu0 0.0
      %476 = vmatmul.mubr.f32.gmra.mxu0 %v306
      %v477 = vpop.f32.mrf.mxu0
      %v478 = vadd.f32 0.0, %v477
      %v479 = vpop.f32.mrf.mxu0
      %480 = vmatprep.mubr.f32.mxu0 0.0
      %481 = vmatmul.mubr.f32.gmra.mxu0 %v309
      %v482 = vpop.f32.mrf.mxu0
      %v483 = vadd.f32 0.0, %v482
      %v484 = vpop.f32.mrf.mxu0
      %485 = vmatprep.mubr.f32.mxu0 0.0
      %486 = vmatmul.mubr.f32.gmra.mxu0 %v312
      %v487 = vpop.f32.mrf.mxu0
      %v488 = vadd.f32 0.0, %v487
      %v489 = vpop.f32.mrf.mxu0
      %490 = vmatprep.mubr.f32.mxu0 0.0
      %491 = vmatmul.mubr.f32.gmra.mxu0 %v315
      %v492 = vpop.f32.mrf.mxu0
      %v493 = vadd.f32 0.0, %v492
      %v494 = vpop.f32.mrf.mxu0
      %495 = vmatprep.mubr.f32.mxu0 0.0
      %496 = vmatmul.mubr.f32.gmra.mxu0 %v318
      %v497 = vpop.f32.mrf.mxu0
      %v498 = vadd.f32 0.0, %v497
      %v499 = vpop.f32.mrf.mxu0
      %500 = vmatprep.mubr.f32.mxu0 0.0
      %501 = vmatmul.mubr.f32.gmra.mxu0 %v321
      %v502 = vpop.f32.mrf.mxu0
      %v503 = vadd.f32 0.0, %v502
      %v504 = vpop.f32.mrf.mxu0
      %505 = vmatprep.mubr.f32.mxu0 0.0
      %506 = vmatmul.mubr.f32.gmra.mxu0 %v324
      %v507 = vpop.f32.mrf.mxu0
      %v508 = vadd.f32 0.0, %v507
      %v509 = vpop.f32.mrf.mxu0
      %510 = vmatprep.mubr.f32.mxu0 0.0
      %511 = vmatmul.mubr.f32.gmra.mxu0 %v327
      %v512 = vpop.f32.mrf.mxu0
      %v513 = vadd.f32 0.0, %v512
      %v514 = vpop.f32.mrf.mxu0
      %515 = vmatprep.mubr.f32.mxu0 0.0
      %516 = vmatmul.mubr.f32.gmra.mxu0 %v330
      %v517 = vpop.f32.mrf.mxu0
      %v518 = vadd.f32 0.0, %v517
      %v519 = vpop.f32.mrf.mxu0
      %520 = vmatprep.mubr.f32.mxu0 0.0
      %521 = vmatmul.mubr.f32.gmra.mxu0 %v333
      %v522 = vpop.f32.mrf.mxu0
      %v523 = vadd.f32 0.0, %v522
      %v524 = vpop.f32.mrf.mxu0
      %525 = vmatprep.mubr.f32.mxu0 0.0
      %526 = vmatmul.mubr.f32.gmra.mxu0 %v336
      %v527 = vpop.f32.mrf.mxu0
      %v528 = vadd.f32 0.0, %v527
      %v529 = vpop.f32.mrf.mxu0
      %530 = vmatprep.mubr.f32.mxu0 0.0
      %531 = vmatmul.mubr.f32.gmra.mxu0 %v339
      %v532 = vpop.f32.mrf.mxu0
      %v533 = vadd.f32 0.0, %v532
      %v534 = vpop.f32.mrf.mxu0
      %535 = vmatprep.mubr.f32.mxu0 0.0
      %536 = vmatmul.mubr.f32.gmra.mxu0 %v342
      %v537 = vpop.f32.mrf.mxu0
      %v538 = vadd.f32 0.0, %v537
      %v539 = vpop.f32.mrf.mxu0
      %540 = vmatprep.mubr.f32.mxu0 0.0
      %541 = vmatmul.mubr.f32.gmra.mxu0 %v345
      %v542 = vpop.f32.mrf.mxu0
      %v543 = vadd.f32 0.0, %v542
      %v544 = vpop.f32.mrf.mxu0
      %545 = vmatprep.mubr.f32.mxu0 0.0
      %546 = vmatmul.mubr.f32.gmra.mxu0 %v348
      %v547 = vpop.f32.mrf.mxu0
      %v548 = vadd.f32 0.0, %v547
      %v549 = vpop.f32.mrf.mxu0
      %550 = vmatprep.mubr.f32.mxu0 0.0
      %551 = vmatmul.mubr.f32.gmra.mxu0 %v351
      %v552 = vpop.f32.mrf.mxu0
      %v553 = vadd.f32 0.0, %v552
      %v554 = vpop.f32.mrf.mxu0
      %555 = vmatprep.mubr.f32.mxu0 0.0
      %556 = vmatmul.mubr.f32.gmra.mxu0 %v354
      %v557 = vpop.f32.mrf.mxu0
      %v558 = vadd.f32 0.0, %v557
      %v559 = vpop.f32.mrf.mxu0
      %560 = vmatprep.mubr.f32.mxu0 0.0
      %561 = vmatmul.mubr.f32.gmra.mxu0 %v357
      %v562 = vpop.f32.mrf.mxu0
      %v563 = vadd.f32 0.0, %v562
      %v564 = vpop.f32.mrf.mxu0
      %565 = vmatprep.mubr.f32.mxu0 0.0
      %566 = vmatmul.mubr.f32.gmra.mxu0 %v360
      %v567 = vpop.f32.mrf.mxu0
      %v568 = vadd.f32 0.0, %v567
      %v569 = vpop.f32.mrf.mxu0
      %570 = vmatprep.mubr.f32.mxu0 0.0
      %571 = vmatmul.mubr.f32.gmra.mxu0 %v363
      %v572 = vpop.f32.mrf.mxu0
      %v573 = vadd.f32 0.0, %v572
      %v574 = vpop.f32.mrf.mxu0
      %575 = vmatprep.mubr.f32.mxu0 0.0
      %576 = vmatmul.mubr.f32.gmra.mxu0 %v366
      %v577 = vpop.f32.mrf.mxu0
      %v578 = vadd.f32 0.0, %v577
      %v579 = vpop.f32.mrf.mxu0
      %580 = vmatprep.mubr.f32.mxu0 0.0
      %581 = vmatmul.mubr.f32.gmra.mxu0 %v369
      %v582 = vpop.f32.mrf.mxu0
      %v583 = vadd.f32 0.0, %v582
      %v584 = vpop.f32.mrf.mxu0
      %585 = vmatprep.mubr.f32.mxu0 0.0
      %586 = vmatmul.mubr.f32.gmra.mxu0 %v372
      %v587 = vpop.f32.mrf.mxu0
      %v588 = vadd.f32 0.0, %v587
      %v589 = vpop.f32.mrf.mxu0
      %590 = vmatprep.mubr.f32.mxu0 0.0
      %591 = vmatmul.mubr.f32.gmra.mxu0 %v375
      %v592 = vpop.f32.mrf.mxu0
      %v593 = vadd.f32 0.0, %v592
      %v594 = vpop.f32.mrf.mxu0
      %595 = vmatprep.mubr.f32.mxu0 0.0
      %596 = vmatmul.mubr.f32.gmra.mxu0 %v378
      %v597 = vpop.f32.mrf.mxu0
      %v598 = vadd.f32 0.0, %v597
      %v599 = vpop.f32.mrf.mxu0
      %600 = vmatprep.mubr.f32.mxu0 0.0
      %601 = vmatmul.mubr.f32.gmra.mxu0 %v381
      %v602 = vpop.f32.mrf.mxu0
      %v603 = vadd.f32 0.0, %v602
      %v604 = vpop.f32.mrf.mxu0
      %605 = vmatprep.mubr.f32.mxu0 0.0
      %606 = vmatmul.mubr.f32.gmra.mxu0 %v384
      %v607 = vpop.f32.mrf.mxu0
      %v608 = vadd.f32 0.0, %v607
      %v609 = vpop.f32.mrf.mxu0
      %610 = vdwg.mxu0
      %611 = vst.msk [vmem:[%s232] sm:$0xff] %vm289, %v453
      %612 = vst.msk [vmem:[%s232 + $0x8] sm:$0xff] %vm289, %v458
      %613 = vst.msk [vmem:[%s232 + $0x10] sm:$0xff] %vm289, %v463
      %614 = vst.msk [vmem:[%s232 + $0x18] sm:$0xff] %vm289, %v468
      %615 = vst.msk [vmem:[%s232 + $0x20] sm:$0xff] %vm289, %v473
      %616 = vst.msk [vmem:[%s232 + $0x28] sm:$0xff] %vm289, %v478
      %617 = vst.msk [vmem:[%s232 + $0x30] sm:$0xff] %vm289, %v483
      %618 = vst.msk [vmem:[%s232 + $0x38] sm:$0xff] %vm289, %v488
      %619 = vst.msk [vmem:[%s232 + $0x40] sm:$0xff] %vm289, %v493
      %620 = vst.msk [vmem:[%s232 + $0x48] sm:$0xff] %vm289, %v498
      %621 = vst.msk [vmem:[%s232 + $0x50] sm:$0xff] %vm289, %v503
      %622 = vst.msk [vmem:[%s232 + $0x58] sm:$0xff] %vm289, %v508
      %623 = vst.msk [vmem:[%s232 + $0x60] sm:$0xff] %vm289, %v513
      %624 = vst.msk [vmem:[%s232 + $0x68] sm:$0xff] %vm289, %v518
      %625 = vst.msk [vmem:[%s232 + $0x70] sm:$0xff] %vm289, %v523
      %626 = vst.msk [vmem:[%s232 + $0x78] sm:$0xff] %vm289, %v528
      %627 = vst.msk [vmem:[%s232 + $0x80] sm:$0xff] %vm289, %v533
      %628 = vst.msk [vmem:[%s232 + $0x88] sm:$0xff] %vm289, %v538
      %629 = vst.msk [vmem:[%s232 + $0x90] sm:$0xff] %vm289, %v543
      %630 = vst.msk [vmem:[%s232 + $0x98] sm:$0xff] %vm289, %v548
      %631 = vst.msk [vmem:[%s232 + $0xa0] sm:$0xff] %vm289, %v553
      %632 = vst.msk [vmem:[%s232 + $0xa8] sm:$0xff] %vm289, %v558
      %633 = vst.msk [vmem:[%s232 + $0xb0] sm:$0xff] %vm289, %v563
      %634 = vst.msk [vmem:[%s232 + $0xb8] sm:$0xff] %vm289, %v568
      %635 = vst.msk [vmem:[%s232 + $0xc0] sm:$0xff] %vm289, %v573
      %636 = vst.msk [vmem:[%s232 + $0xc8] sm:$0xff] %vm289, %v578
      %637 = vst.msk [vmem:[%s232 + $0xd0] sm:$0xff] %vm289, %v583
      %638 = vst.msk [vmem:[%s232 + $0xd8] sm:$0xff] %vm289, %v588
      %639 = vst.msk [vmem:[%s232 + $0xe0] sm:$0xff] %vm289, %v593
      %640 = vst.msk [vmem:[%s232 + $0xe8] sm:$0xff] %vm289, %v598
      %641 = vst.msk [vmem:[%s232 + $0xf0] sm:$0xff] %vm289, %v603
      %642 = vst.msk [vmem:[%s232 + $0xf8] sm:$0xff] %vm289, %v608
      %p643 = scmp.lt.s32.totalorder %s18, 1
      %s644 = scalar_select %p643, %s18, 1
      %p645 = scmp.lt.s32.totalorder %s19, 0
      %s646 = scalar_select %p645, %s19, 0
      %s647 = smul.addr %s644, 32
      %s648 = sadd.s32 %s646, %s647
      %s649 = smul.addr %s648, 8
      %s650 = scalar_lea.vmem %s3, %s649
      // Predicated region
      $region33: #{tpu_custom_call.1} parent=31 // pred_check
        %p651 = pneg %p123
      $region34: #{tpu_custom_call.1} parent=31 // pred_check_branch
        %653 = sbr.rel (%p651) target = $region36
      $region35: #{tpu_custom_call.1} parent=31 // pred_region
        _
      $region36: #{tpu_custom_call.1} parent=31 // pred_fallthru
        _
    $region32: #{tpu_custom_call.1} parent=5 // pred_fallthru
      _
    %p654 = scmp.le.s32.totalorder 2, %s9
    // Predicated region
    $region37: #{tpu_custom_call.1} parent=5 // pred_check
      %p655 = pneg %p654
    $region38: #{tpu_custom_call.1} parent=5 // pred_check_branch
      %657 = sbr.rel (%p655) target = $region40
    $region39: #{tpu_custom_call.1} parent=5 // pred_region
      %s658 = ssub.s32 %s9, 2
      // Predicated region
      $region41: #{tpu_custom_call.1} parent=39 // pred_check
        %p659 = pneg %p129
      $region42: #{tpu_custom_call.1} parent=39 // pred_check_branch
        %661 = sbr.rel (%p659) target = $region44
      $region43: #{tpu_custom_call.1} parent=39 // pred_region
        %p662 = scmp.lt.s32.totalorder %s20, 1
        %s663 = scalar_select %p662, %s20, 1
        %p664 = scmp.lt.s32.totalorder %s21, 0
        %s665 = scalar_select %p664, %s21, 0
        %s666 = smul.addr %s663, 32
        %s667 = sadd.s32 %s665, %s666
        %s668 = smul.addr %s667, 8
        %s669 = scalar_lea.vmem %s3, %s668
      $region44: #{tpu_custom_call.1} parent=39 // pred_fallthru
        _
    $region40: #{tpu_custom_call.1} parent=5 // pred_fallthru
      _
  $region6: #{tpu_custom_call.1} parent=0 // loop_footer
    %s13 = sadd.s32 1, %s9
  $region7: #{tpu_custom_call.1} parent=0 // loop_footer_branch
    %8 = sbr.rel target = $region3
  $region8: #{tpu_custom_call.1} parent=0 // loop_exit
    _

</llo_original>
